<compile_context>
chip_gen: v7x
topology: tpu7x:2x2x1
jax: 0.10.0
libtpu: 0.0.40
codegen_flags: <defaults>
</compile_context>

<pallas_src>
import functools

import jax
import jax.numpy as jnp
import numpy as np
from jax.experimental import pallas as pl
from jax.experimental.pallas import tpu as pltpu

_VMEM_LIMIT = 32 * 1024 * 1024  # safe on v5e/v6e (128 MiB) and v7x (64 MiB)


# --------------------------- tiling helpers --------------------------------

def _row_tile(n_rows, target=512, mult=16):
    """Largest row tile <= target, multiple of `mult` (single step when R small)."""
    if n_rows <= mult:
        return n_rows
    if n_rows <= target and n_rows % mult == 0:
        return n_rows
    return max(mult, min(target, (n_rows // mult) * mult))


# ----------------------------- Pallas kernels ------------------------------

def _ln_linear_kernel(x_ref, lnw_ref, lnb_ref, w_ref, b_ref, o_ref, *, eps):
    """Fused LayerNorm + Linear over one row tile (bf16 matmul, f32 accumulate)."""
    x = x_ref[...].astype(jnp.float32)
    mu = jnp.mean(x, axis=-1, keepdims=True)
    xc = x - mu
    var = jnp.mean(xc * xc, axis=-1, keepdims=True)
    xn = xc * jax.lax.rsqrt(var + eps) * lnw_ref[...] + lnb_ref[...]
    y = jnp.dot(xn.astype(jnp.bfloat16), w_ref[...],
                preferred_element_type=jnp.float32) + b_ref[...]
    o_ref[...] = y.astype(o_ref.dtype)


def ln_linear_pallas(x2d, lnw, lnb, w, b, *, eps=1e-6, row_tile=512,
                     out_dtype=jnp.float32):
    R, Cin = x2d.shape
    Cout = w.shape[1]
    tm = _row_tile(R, row_tile)
    # TODO(synk): grid-invariant inputs (LN params, weight, bias) could use
    # pipeline_mode=pl.Buffered(1) to avoid useless double-buffering.
    return pl.pallas_call(
        functools.partial(_ln_linear_kernel, eps=eps),
        out_shape=jax.ShapeDtypeStruct((R, Cout), out_dtype),
        grid=(pl.cdiv(R, tm),),
        in_specs=[pl.BlockSpec((tm, Cin), lambda i: (i, 0)),
                  pl.BlockSpec((1, Cin), lambda i: (0, 0)),
                  pl.BlockSpec((1, Cin), lambda i: (0, 0)),
                  pl.BlockSpec((Cin, Cout), lambda i: (0, 0)),
                  pl.BlockSpec((1, Cout), lambda i: (0, 0))],
        out_specs=pl.BlockSpec((tm, Cout), lambda i: (i, 0)),
        compiler_params=pltpu.CompilerParams(
            dimension_semantics=("parallel",), vmem_limit_bytes=_VMEM_LIMIT),
    )(x2d, lnw.reshape(1, Cin), lnb.reshape(1, Cin), w, b.reshape(1, Cout))


def _ln_qproj_kernel(q_ref, lnw_ref, lnb_ref, w_ref, b_ref, o_ref, *,
                     eps, num_heads, num_levels, num_points, hlp_pad):
    """Fused LN(q) + merged offset/attn projection + per-head softmax.

    Output columns (width 3*hlp_pad): [off_x (HLP, zero-padded to hlp_pad) |
    off_y (idem) | per-head softmaxed attention weights (idem)], HLP ordered
    (head, level, point).  Offset normalisation (1/W_l, 1/H_l) is folded into
    w_ref / b_ref on the host; the reference-point add happens in K3.
    """
    H, L, P = num_heads, num_levels, num_points
    LP = L * P
    HLP = H * LP
    x = q_ref[...].astype(jnp.float32)
    mu = jnp.mean(x, axis=-1, keepdims=True)
    xc = x - mu
    var = jnp.mean(xc * xc, axis=-1, keepdims=True)
    qn = xc * jax.lax.rsqrt(var + eps) * lnw_ref[...] + lnb_ref[...]
    proj = jnp.dot(qn.astype(jnp.bfloat16), w_ref[...],
                   preferred_element_type=jnp.float32) + b_ref[...]

    # per-head softmax over the joint (level, point) axis
    # TODO(synk): if the last row tile is padded (R % tm != 0) the padded rows
    # run exp() on uninitialised data; mask with pl.when if NaN-checking.
    parts = [proj[:, :2 * hlp_pad]]
    for h in range(H):
        lg = proj[:, 2 * hlp_pad + h * LP:2 * hlp_pad + (h + 1) * LP]
        m = jnp.max(lg, axis=-1, keepdims=True)
        e = jnp.exp(lg - m)
        parts.append(e / jnp.sum(e, axis=-1, keepdims=True))
    if hlp_pad > HLP:
        parts.append(jnp.zeros((x.shape[0], hlp_pad - HLP), jnp.float32))
    o_ref[...] = jnp.concatenate(parts, axis=-1).astype(o_ref.dtype)


def ln_qproj_pallas(q2d, lnw, lnb, w_m, b_m, *, num_heads, num_levels,
                    num_points, hlp_pad, eps=1e-6, row_tile=512):
    R, C = q2d.shape
    Cout = w_m.shape[1]
    tm = _row_tile(R, row_tile)
    kern = functools.partial(_ln_qproj_kernel, eps=eps, num_heads=num_heads,
                             num_levels=num_levels, num_points=num_points,
                             hlp_pad=hlp_pad)
    return pl.pallas_call(
        kern,
        out_shape=jax.ShapeDtypeStruct((R, Cout), jnp.float32),
        grid=(pl.cdiv(R, tm),),
        in_specs=[pl.BlockSpec((tm, C), lambda i: (i, 0)),
                  pl.BlockSpec((1, C), lambda i: (0, 0)),
                  pl.BlockSpec((1, C), lambda i: (0, 0)),
                  pl.BlockSpec((C, Cout), lambda i: (0, 0)),
                  pl.BlockSpec((1, Cout), lambda i: (0, 0))],
        out_specs=pl.BlockSpec((tm, Cout), lambda i: (i, 0)),
        compiler_params=pltpu.CompilerParams(
            dimension_semantics=("parallel",), vmem_limit_bytes=_VMEM_LIMIT),
    )(q2d, lnw.reshape(1, C), lnb.reshape(1, C), w_m, b_m.reshape(1, Cout))


def _deform_out_kernel(val_ref, qa_ref, ref_ref, q_ref, w_out_ref, b_out_ref,
                       gamma_ref, o_ref, *, spatial_shapes, num_heads,
                       num_points, head_dim, hlp_pad, hw_chunk=512):
    """Deformable-attention core + output projection + gamma residual.

    One (batch, query-tile) pair per grid point.  Per level the bilinear
    (align_corners=False, zeros padding) triangle weights are built per
    HW-chunk (so no full (tq, HW) temporary) and contracted with the bf16
    value chunk on the MXU; per-head f32 accumulators stay in registers and
    the output projection is a sum over per-head w_out slices, so the only
    store is the lane-dense (tq, C) result.
    """
    H, P, Dh = num_heads, num_points, head_dim
    L = len(spatial_shapes)
    LP = L * P
    tq = q_ref.shape[1]

    acc = [jnp.zeros((tq, Dh), jnp.float32) for _ in range(H)]

    # TODO(synk): at production resolutions stream the value tensor with
    # memory_space=pl.ANY + double-buffered pltpu.make_async_copy per chunk,
    # and move heads onto a grid axis / lax.fori_loop to bound live ranges.
    start = 0
    for l, (Hl, Wl) in enumerate(spatial_shapes):
        HW = Hl * Wl
        rx = ref_ref[0, :, l:l + 1]                       # (tq, 1) f32
        ry = ref_ref[0, :, L + l:L + l + 1]
        # per-head sampling coords / attention weights for this level (f32)
        px, py, aw = [], [], []
        for h in range(H):
            c0 = h * LP + l * P
            px.append((rx + qa_ref[0, :, c0:c0 + P]) * float(Wl) - 0.5)
            py.append((ry + qa_ref[0, :, hlp_pad + c0:hlp_pad + c0 + P])
                      * float(Hl) - 0.5)
            aw.append(qa_ref[0, :, 2 * hlp_pad + c0:2 * hlp_pad + c0 + P])
        # HW-chunked bilinear-weight build fused with the value contraction.
        for cstart in range(0, HW, hw_chunk):
            cw = min(hw_chunk, HW - cstart)
            idx = jax.lax.broadcasted_iota(jnp.int32, (1, cw), 1) + cstart
            gx = (idx % Wl).astype(jnp.float32)
            gy = (idx // Wl).astype(jnp.float32)
            v_blk = val_ref[0, start + cstart:start + cstart + cw, :]  # bf16
            for h in range(H):
                w_mat = jnp.zeros((tq, cw), jnp.float32)
                for p in range(P):
                    wx = jnp.maximum(1.0 - jnp.abs(px[h][:, p:p + 1] - gx), 0.0)
                    wy = jnp.maximum(1.0 - jnp.abs(py[h][:, p:p + 1] - gy), 0.0)
                    w_mat = w_mat + aw[h][:, p:p + 1] * (wx * wy)
                acc[h] = acc[h] + jnp.dot(
                    w_mat.astype(jnp.bfloat16), v_blk[:, h * Dh:(h + 1) * Dh],
                    preferred_element_type=jnp.float32)
        start += HW

    # fused output projection (sum over per-head weight slices) + gamma residual
    attn = b_out_ref[...]
    for h in range(H):
        attn = attn + jnp.dot(acc[h].astype(jnp.bfloat16),
                              w_out_ref[h * Dh:(h + 1) * Dh, :],
                              preferred_element_type=jnp.float32)
    out = q_ref[0] + gamma_ref[...] * attn
    o_ref[...] = out[None].astype(o_ref.dtype)


def deform_outproj_pallas(value3d, qa3d, ref3d, q3d, w_out, b_out, gamma, *,
                          spatial_shapes, num_heads, num_points, hlp_pad,
                          q_tile=128):
    B, Nv, Dv = value3d.shape
    _, Nq, A = qa3d.shape
    C = q3d.shape[-1]
    L2 = ref3d.shape[-1]
    Dh = Dv // num_heads
    if Nq <= 8:
        tq = Nq
    else:
        tq = max(8, (min(q_tile, Nq) // 8) * 8)
    kern = functools.partial(_deform_out_kernel,
                             spatial_shapes=tuple(spatial_shapes),
                             num_heads=num_heads, num_points=num_points,
                             head_dim=Dh, hlp_pad=hlp_pad)
    return pl.pallas_call(
        kern,
        out_shape=jax.ShapeDtypeStruct((B, Nq, C), jnp.float32),
        grid=(B, pl.cdiv(Nq, tq)),
        in_specs=[pl.BlockSpec((1, Nv, Dv), lambda b, i: (b, 0, 0)),
                  pl.BlockSpec((1, tq, A), lambda b, i: (b, i, 0)),
                  pl.BlockSpec((1, tq, L2), lambda b, i: (b, i, 0)),
                  pl.BlockSpec((1, tq, C), lambda b, i: (b, i, 0)),
                  pl.BlockSpec((Dv, C), lambda b, i: (0, 0)),
                  pl.BlockSpec((1, C), lambda b, i: (0, 0)),
                  pl.BlockSpec((1, C), lambda b, i: (0, 0))],
        out_specs=pl.BlockSpec((1, tq, C), lambda b, i: (b, i, 0)),
        compiler_params=pltpu.CompilerParams(
            dimension_semantics=("parallel", "parallel"),
            vmem_limit_bytes=_VMEM_LIMIT),
    )(value3d, qa3d, ref3d, q3d, w_out, b_out.reshape(1, C), gamma.reshape(1, C))


# ------------------------------ module glue --------------------------------

def init_params(key, embed_dim, num_heads, num_points, num_levels,
                deform_ratio=1.0, init_values=0.5):
    d_value = int(embed_dim * deform_ratio)
    ks = jax.random.split(key, 6)
    # Linear weights stored as (in, out) so kernels compute y = x @ W + b.
    return dict(
        num_heads=num_heads, num_points=num_points,
        ln1_w=jnp.ones((embed_dim,), jnp.float32),
        ln1_b=jnp.zeros((embed_dim,), jnp.float32),
        ln2_w=jnp.ones((embed_dim,), jnp.float32),
        ln2_b=jnp.zeros((embed_dim,), jnp.float32),
        w_value=0.02 * jax.random.normal(ks[0], (embed_dim, d_value), jnp.float32),
        b_value=jnp.zeros((d_value,), jnp.float32),
        w_offset=0.02 * jax.random.normal(
            ks[1], (embed_dim, num_heads * num_levels * num_points * 2), jnp.float32),
        b_offset=jax.random.uniform(
            ks[2], (num_heads * num_levels * num_points * 2,),
            jnp.float32, minval=-3.0, maxval=3.0),
        w_attn=0.02 * jax.random.normal(
            ks[3], (embed_dim, num_heads * num_levels * num_points), jnp.float32),
        b_attn=jnp.zeros((num_heads * num_levels * num_points,), jnp.float32),
        w_out=0.02 * jax.random.normal(ks[4], (d_value, embed_dim), jnp.float32),
        b_out=jnp.zeros((embed_dim,), jnp.float32),
        gamma=init_values * jnp.ones((embed_dim,), jnp.float32),
    )


def injector_forward_pallas(params, q, reference_points, kv, spatial_shapes_static):
    # TODO(synk): spatial_shapes / level_start_index are consumed as static
    # Python constants (Pallas block shapes must be static); runtime jnp
    # copies passed for API parity are unused.
    B, Nq, C = q.shape
    _, Nv, _ = kv.shape
    H = params["num_heads"]
    P = params["num_points"]
    L = len(spatial_shapes_static)
    Dv = params["w_value"].shape[1]
    HLP = H * L * P
    HLPp = ((HLP + 127) // 128) * 128        # lane-aligned slab width

    # ---- trace-time parameter packing (merged, pre-normalised, lane-padded,
    #      bf16 projection weight; biases stay f32) ----
    shapes_f = jnp.asarray(spatial_shapes_static, jnp.float32)           # (L,2)=(H_l,W_l)
    inv_norm = 1.0 / jnp.stack([shapes_f[:, 1], shapes_f[:, 0]], -1)      # (L,2)=(1/W,1/H)
    w_off = params["w_offset"].reshape(C, H, L, P, 2) * inv_norm[None, None, :, None, :]
    b_off = params["b_offset"].reshape(H, L, P, 2) * inv_norm[None, :, None, :]

    def padc(a):
        if HLPp == HLP:
            return a
        return jnp.pad(a, [(0, 0)] * (a.ndim - 1) + [(0, HLPp - HLP)])

    w_merged = jnp.concatenate([padc(w_off[..., 0].reshape(C, HLP)),
                                padc(w_off[..., 1].reshape(C, HLP)),
                                padc(params["w_attn"])], axis=1).astype(jnp.bfloat16)
    b_merged = jnp.concatenate([padc(b_off[..., 0].reshape(1, HLP)),
                                padc(b_off[..., 1].reshape(1, HLP)),
                                padc(params["b_attn"].reshape(1, HLP))],
                               axis=1).reshape(-1)

    # reference points -> (B, Nq, 2L) laid out [x_0..x_{L-1}, y_0..y_{L-1}]
    ref = jnp.broadcast_to(reference_points, (B, Nq, L, 2))
    ref3 = jnp.transpose(ref, (0, 1, 3, 2)).reshape(B, Nq, 2 * L)

    # ---- K1: LN(kv) + value projection (bf16 value out) ----
    value = ln_linear_pallas(kv.reshape(B * Nv, C), params["ln2_w"], params["ln2_b"],
                             params["w_value"].astype(jnp.bfloat16),
                             params["b_value"],
                             out_dtype=jnp.bfloat16).reshape(B, Nv, Dv)

    # ---- K2: LN(q) + merged offset/attn projection + per-head softmax ----
    qa = ln_qproj_pallas(q.reshape(B * Nq, C), params["ln1_w"], params["ln1_b"],
                         w_merged, b_merged, num_heads=H, num_levels=L,
                         num_points=P, hlp_pad=HLPp).reshape(B, Nq, 3 * HLPp)

    # ---- K3: deformable attention + out-proj + gamma residual ----
    out = deform_outproj_pallas(value, qa, ref3, q,
                                params["w_out"].astype(jnp.bfloat16),
                                params["b_out"], params["gamma"],
                                spatial_shapes=spatial_shapes_static,
                                num_heads=H, num_points=P, hlp_pad=HLPp)
    return out


# ----------------------- pure-JAX reference (for check) --------------------

def injector_forward_reference(params, q, reference_points, kv, spatial_shapes_static):
    B, Nq, C = q.shape
    _, Nv, _ = kv.shape
    H = params["num_heads"]
    P = params["num_points"]
    L = len(spatial_shapes_static)
    Dv = params["w_value"].shape[1]
    Dh = Dv // H

    def ln(x, w, b, eps=1e-6):
        mu = x.mean(-1, keepdims=True)
        var = ((x - mu) ** 2).mean(-1, keepdims=True)
        return (x - mu) / jnp.sqrt(var + eps) * w + b

    qn = ln(q, params["ln1_w"], params["ln1_b"])
    kvn = ln(kv, params["ln2_w"], params["ln2_b"])
    value = (kvn @ params["w_value"] + params["b_value"]).reshape(B, Nv, H, Dh)
    offs = (qn @ params["w_offset"] + params["b_offset"]).reshape(B, Nq, H, L, P, 2)
    logits = (qn @ params["w_attn"] + params["b_attn"]).reshape(B, Nq, H, L, P)
    aw = jax.nn.softmax(logits.reshape(B, Nq, H, L * P), axis=-1).reshape(B, Nq, H, L, P)

    shapes_f = jnp.asarray(spatial_shapes_static, jnp.float32)
    offset_norm = jnp.stack([shapes_f[:, 1], shapes_f[:, 0]], -1)
    loc = (reference_points[:, :, None, :, None, :]
           + offs / offset_norm[None, None, None, :, None, :])

    out = jnp.zeros((B, Nq, H, Dh), jnp.float32)
    start = 0
    for l, (Hl, Wl) in enumerate(spatial_shapes_static):
        HW = Hl * Wl
        v_l = value[:, start:start + HW]                   # (B, HW, H, Dh)
        idx = jnp.arange(HW)
        gx = (idx % Wl).astype(jnp.float32)
        gy = (idx // Wl).astype(jnp.float32)
        px = loc[:, :, :, l, :, 0] * Wl - 0.5              # (B, Nq, H, P)
        py = loc[:, :, :, l, :, 1] * Hl - 0.5
        wx = jnp.maximum(1.0 - jnp.abs(px[..., None] - gx), 0.0)
        wy = jnp.maximum(1.0 - jnp.abs(py[..., None] - gy), 0.0)
        w_mat = jnp.einsum("bqhp,bqhpv->bqhv", aw[:, :, :, l, :], wx * wy)
        out = out + jnp.einsum("bqhv,bvhd->bqhd", w_mat, v_l)
        start += HW
    attn = out.reshape(B, Nq, H * Dh) @ params["w_out"] + params["b_out"]
    return q + params["gamma"] * attn


# ----------------------------------- main -----------------------------------

if __name__ == "__main__":
    key = jax.random.PRNGKey(0)
    B, Nq, C = 2, 64, 32
    num_heads, num_points, num_levels = 4, 4, 3
    spatial_shapes_static = ((8, 8), (4, 8), (4, 4))        # (H_l, W_l) per level
    Nv = sum(h * w for h, w in spatial_shapes_static)       # 112

    k1, k2, k3, k4 = jax.random.split(key, 4)
    q = jax.random.normal(k1, (B, Nq, C), jnp.float32)
    kv = jax.random.normal(k2, (B, Nv, C), jnp.float32)
    reference_points = jax.random.uniform(k3, (B, Nq, num_levels, 2), jnp.float32)
    params = init_params(k4, C, num_heads, num_points, num_levels,
                         deform_ratio=1.0, init_values=0.5)

    # API-parity tensors (unused by the Pallas path; shapes are static):
    spatial_shapes = jnp.asarray(spatial_shapes_static, jnp.int32)
    level_start_index = jnp.asarray(
        np.cumsum([0] + [h * w for h, w in spatial_shapes_static[:-1]]), jnp.int32)

    out = injector_forward_pallas(params, q, reference_points, kv, spatial_shapes_static)
    out = jax.block_until_ready(out)

    ref = injector_forward_reference(params, q, reference_points, kv, spatial_shapes_static)
    # bf16 MXU operands (f32 accumulation) -> loosened tolerances vs f32 reference
    np.testing.assert_allclose(np.asarray(out), np.asarray(ref), rtol=2e-2, atol=5e-3)
    assert out.shape == (B, Nq, C)
    print("KERNEL_OK")
</pallas_src>

<mosaic_0001>
module attributes {stable_mosaic.version = 11 : i64} {
  func.func @_ln_linear_kernel(%arg0: i32, %arg1: memref<224x32xf32, #tpu.memory_space<vmem>>, %arg2: memref<1x32xf32, #tpu.memory_space<vmem>>, %arg3: memref<1x32xf32, #tpu.memory_space<vmem>>, %arg4: memref<32x32xbf16, #tpu.memory_space<vmem>>, %arg5: memref<1x32xf32, #tpu.memory_space<vmem>>, %arg6: memref<224x32xbf16, #tpu.memory_space<vmem>>) attributes {dimension_semantics = [#tpu.dimension_semantics<parallel>], iteration_bounds = array<i64: 1>, scalar_prefetch = 0 : i64, scratch_operands = 0 : i64, tpu.core_type = #tpu.core_type<tc>, window_params = [{transform_indices = @transform_0, window_bounds = array<i64: 224, 32>}, {pipeline_mode = #tpu.pipeline_mode<synchronous>, transform_indices = @transform_1, window_bounds = array<i64: 1, 32>}, {pipeline_mode = #tpu.pipeline_mode<synchronous>, transform_indices = @transform_2, window_bounds = array<i64: 1, 32>}, {pipeline_mode = #tpu.pipeline_mode<synchronous>, transform_indices = @transform_3, window_bounds = array<i64: 32, 32>}, {pipeline_mode = #tpu.pipeline_mode<synchronous>, transform_indices = @transform_4, window_bounds = array<i64: 1, 32>}, {transform_indices = @transform_5, window_bounds = array<i64: 224, 32>}]} {
    %c0 = arith.constant 0 : index
    %c0_0 = arith.constant 0 : index
    %0 = vector.load %arg1[%c0, %c0_0] : memref<224x32xf32, #tpu.memory_space<vmem>>, vector<224x32xf32>
    %cst = arith.constant dense<0.000000e+00> : vector<224xf32>
    %1 = vector.multi_reduction <add>, %0, %cst [1] : vector<224x32xf32> to vector<224xf32>
    %2 = vector.shape_cast %1 : vector<224xf32> to vector<224x1xf32>
    %cst_1 = arith.constant 3.200000e+01 : f32
    %3 = vector.broadcast %cst_1 : f32 to vector<224x1xf32>
    %4 = arith.divf %2, %3 : vector<224x1xf32>
    %5 = vector.broadcast %4 : vector<224x1xf32> to vector<224x32xf32>
    %6 = arith.subf %0, %5 : vector<224x32xf32>
    %7 = arith.mulf %6, %6 : vector<224x32xf32>
    %cst_2 = arith.constant dense<0.000000e+00> : vector<224xf32>
    %8 = vector.multi_reduction <add>, %7, %cst_2 [1] : vector<224x32xf32> to vector<224xf32>
    %9 = vector.shape_cast %8 : vector<224xf32> to vector<224x1xf32>
    %cst_3 = arith.constant 3.200000e+01 : f32
    %10 = vector.broadcast %cst_3 : f32 to vector<224x1xf32>
    %11 = arith.divf %9, %10 : vector<224x1xf32>
    %cst_4 = arith.constant 9.99999997E-7 : f32
    %12 = vector.broadcast %cst_4 : f32 to vector<224x1xf32>
    %13 = arith.addf %11, %12 : vector<224x1xf32>
    %14 = math.rsqrt %13 : vector<224x1xf32>
    %15 = vector.broadcast %14 : vector<224x1xf32> to vector<224x32xf32>
    %16 = arith.mulf %6, %15 : vector<224x32xf32>
    %c0_5 = arith.constant 0 : index
    %c0_6 = arith.constant 0 : index
    %17 = vector.load %arg2[%c0_5, %c0_6] : memref<1x32xf32, #tpu.memory_space<vmem>>, vector<1x32xf32>
    %18 = vector.broadcast %17 : vector<1x32xf32> to vector<224x32xf32>
    %19 = arith.mulf %16, %18 : vector<224x32xf32>
    %c0_7 = arith.constant 0 : index
    %c0_8 = arith.constant 0 : index
    %20 = vector.load %arg3[%c0_7, %c0_8] : memref<1x32xf32, #tpu.memory_space<vmem>>, vector<1x32xf32>
    %21 = vector.broadcast %20 : vector<1x32xf32> to vector<224x32xf32>
    %22 = arith.addf %19, %21 : vector<224x32xf32>
    %23 = arith.truncf %22 : vector<224x32xf32> to vector<224x32xbf16>
    %c0_9 = arith.constant 0 : index
    %c0_10 = arith.constant 0 : index
    %24 = vector.load %arg4[%c0_9, %c0_10] : memref<32x32xbf16, #tpu.memory_space<vmem>>, vector<32x32xbf16>
    %cst_11 = arith.constant dense<0.000000e+00> : vector<224x32xf32>
    %25 = tpu.matmul %23, %24, %cst_11 {dimension_numbers = #tpu.dot_dimension_numbers<[1], [0], [0], [1], [0, 0, 1, 1], [], []>} : vector<224x32xbf16>, vector<32x32xbf16>, vector<224x32xf32> -> vector<224x32xf32>
    %c0_12 = arith.constant 0 : index
    %c0_13 = arith.constant 0 : index
    %26 = vector.load %arg5[%c0_12, %c0_13] : memref<1x32xf32, #tpu.memory_space<vmem>>, vector<1x32xf32>
    %27 = vector.broadcast %26 : vector<1x32xf32> to vector<224x32xf32>
    %28 = arith.addf %25, %27 : vector<224x32xf32>
    %29 = arith.truncf %28 : vector<224x32xf32> to vector<224x32xbf16>
    %c0_14 = arith.constant 0 : index
    %c0_15 = arith.constant 0 : index
    %30 = vector.load %arg6[%c0_14, %c0_15] : memref<224x32xbf16, #tpu.memory_space<vmem>>, vector<224x32xbf16>
    tpu.vector_store %arg6[%c0_14, %c0_15], %29 {strides = array<i32>} : memref<224x32xbf16, #tpu.memory_space<vmem>>, vector<224x32xbf16>,
    return
  }
  func.func @transform_0(%arg0: i32) -> (i32, i32) {
    %c0_i32 = arith.constant 0 : i32
    %c0_i32_0 = arith.constant 0 : i32
    return %arg0, %c0_i32 : i32, i32
  }
  func.func @transform_1(%arg0: i32) -> (i32, i32) {
    %c0_i32 = arith.constant 0 : i32
    %c0_i32_0 = arith.constant 0 : i32
    %c0_i32_1 = arith.constant 0 : i32
    return %c0_i32, %c0_i32_0 : i32, i32
  }
  func.func @transform_2(%arg0: i32) -> (i32, i32) {
    %c0_i32 = arith.constant 0 : i32
    %c0_i32_0 = arith.constant 0 : i32
    %c0_i32_1 = arith.constant 0 : i32
    return %c0_i32, %c0_i32_0 : i32, i32
  }
  func.func @transform_3(%arg0: i32) -> (i32, i32) {
    %c0_i32 = arith.constant 0 : i32
    %c0_i32_0 = arith.constant 0 : i32
    %c0_i32_1 = arith.constant 0 : i32
    return %c0_i32, %c0_i32_0 : i32, i32
  }
  func.func @transform_4(%arg0: i32) -> (i32, i32) {
    %c0_i32 = arith.constant 0 : i32
    %c0_i32_0 = arith.constant 0 : i32
    %c0_i32_1 = arith.constant 0 : i32
    return %c0_i32, %c0_i32_0 : i32, i32
  }
  func.func @transform_5(%arg0: i32) -> (i32, i32) {
    %c0_i32 = arith.constant 0 : i32
    %c0_i32_0 = arith.constant 0 : i32
    return %arg0, %c0_i32 : i32, i32
  }
}

</mosaic_0001>

<llo_original>
// kernel: tpu_custom_call.1
$region0: #{tpu_custom_call.1}
  #allocation0 [shape = 'u32[]', space=smem, size = 0x4, offset = 0x4, fixed_abs, tag = 'smem constant byte address 0x4 - core index']
  #allocation1 [shape = 'u32[144,128]{1,0:T(1,128)}', space=vmem, size = 0x12000, scoped, tag = 'internal scratch']
  %s0 = inlined_call_operand.vmem [shape: f32[224,32], index: 0, kind: input, shape index: {}]
  %s1 = inlined_call_operand.vmem [shape: f32[1,32], index: 1, kind: input, shape index: {}]
  %s2 = inlined_call_operand.vmem [shape: f32[1,32], index: 2, kind: input, shape index: {}]
  %s3 = inlined_call_operand.vmem [shape: bf16[32,32], index: 3, kind: input, shape index: {}]
  %s4 = inlined_call_operand.vmem [shape: f32[1,32], index: 4, kind: input, shape index: {}]
  %s5 = inlined_call_operand.vmem [shape: bf16[224,32], index: 5, kind: output, shape index: {}]
  %s6 = sld [smem:[#allocation0]]
  $region30: #{tpu_custom_call.1} parent=0
    _
  %s8 = ssub.s32 1, %s6
  %s9 = scalar_select 0, %s8, %s6
  // Predicated region
  $region2: #{tpu_custom_call.1} parent=0 // pred_check
    _
  $region3: #{tpu_custom_call.1} parent=0 // pred_check_branch
    %11 = sbr.rel (0) target = $region5
  $region4: #{tpu_custom_call.1} parent=0 // pred_region
    _
  $region5: #{tpu_custom_call.1} parent=0 // pred_fallthru
    _
  // Predicated region
  $region6: #{tpu_custom_call.1} parent=0 // pred_check
    _
  $region7: #{tpu_custom_call.1} parent=0 // pred_check_branch
    %13 = sbr.rel (0) target = $region9
  $region8: #{tpu_custom_call.1} parent=0 // pred_region
    _
  $region9: #{tpu_custom_call.1} parent=0 // pred_fallthru
    _
  // Predicated region
  $region10: #{tpu_custom_call.1} parent=0 // pred_check
    _
  $region11: #{tpu_custom_call.1} parent=0 // pred_check_branch
    %15 = sbr.rel (0) target = $region13
  $region12: #{tpu_custom_call.1} parent=0 // pred_region
    _
  $region13: #{tpu_custom_call.1} parent=0 // pred_fallthru
    _
  // Predicated region
  $region14: #{tpu_custom_call.1} parent=0 // pred_check
    _
  $region15: #{tpu_custom_call.1} parent=0 // pred_check_branch
    %17 = sbr.rel (0) target = $region17
  $region16: #{tpu_custom_call.1} parent=0 // pred_region
    _
  $region17: #{tpu_custom_call.1} parent=0 // pred_fallthru
    _
  // Predicated region
  $region18: #{tpu_custom_call.1} parent=0 // pred_check
    _
  $region19: #{tpu_custom_call.1} parent=0 // pred_check_branch
    %19 = sbr.rel (0) target = $region21
  $region20: #{tpu_custom_call.1} parent=0 // pred_region
    _
  $region21: #{tpu_custom_call.1} parent=0 // pred_fallthru
    _
  %v21 = vld [vmem:[%s0] sm:$0xff]
  %v22 = vld [vmem:[%s0 + $0x8] sm:$0xff]
  %v23 = vld [vmem:[%s0 + $0x10] sm:$0xff]
  %v24 = vld [vmem:[%s0 + $0x18] sm:$0xff]
  %v25 = vld [vmem:[%s0 + $0x20] sm:$0xff]
  %v26 = vld [vmem:[%s0 + $0x28] sm:$0xff]
  %v27 = vld [vmem:[%s0 + $0x30] sm:$0xff]
  %v28 = vld [vmem:[%s0 + $0x38] sm:$0xff]
  %v29 = vld [vmem:[%s0 + $0x40] sm:$0xff]
  %v30 = vld [vmem:[%s0 + $0x48] sm:$0xff]
  %v31 = vld [vmem:[%s0 + $0x50] sm:$0xff]
  %v32 = vld [vmem:[%s0 + $0x58] sm:$0xff]
  %v33 = vld [vmem:[%s0 + $0x60] sm:$0xff]
  %v34 = vld [vmem:[%s0 + $0x68] sm:$0xff]
  %v35 = vld [vmem:[%s0 + $0x70] sm:$0xff]
  %v36 = vld [vmem:[%s0 + $0x78] sm:$0xff]
  %v37 = vld [vmem:[%s0 + $0x80] sm:$0xff]
  %v38 = vld [vmem:[%s0 + $0x88] sm:$0xff]
  %v39 = vld [vmem:[%s0 + $0x90] sm:$0xff]
  %v40 = vld [vmem:[%s0 + $0x98] sm:$0xff]
  %v41 = vld [vmem:[%s0 + $0xa0] sm:$0xff]
  %v42 = vld [vmem:[%s0 + $0xa8] sm:$0xff]
  %v43 = vld [vmem:[%s0 + $0xb0] sm:$0xff]
  %v44 = vld [vmem:[%s0 + $0xb8] sm:$0xff]
  %v45 = vld [vmem:[%s0 + $0xc0] sm:$0xff]
  %v46 = vld [vmem:[%s0 + $0xc8] sm:$0xff]
  %v47 = vld [vmem:[%s0 + $0xd0] sm:$0xff]
  %v48 = vld [vmem:[%s0 + $0xd8] sm:$0xff]
  %vm49 = vcmask 261120
  %v50 = vsel %vm49, %v21, 0.0
  %51 = vadd.xlane.f32.xlu0 %v50
  %v52 = vpop.xlane.xlu0 %51
  %v53 = vsel %vm49, %v22, 0.0
  %54 = vadd.xlane.f32.xlu0 %v53
  %v55 = vpop.xlane.xlu0 %54
  %v56 = vsel %vm49, %v23, 0.0
  %57 = vadd.xlane.f32.xlu0 %v56
  %v58 = vpop.xlane.xlu0 %57
  %v59 = vsel %vm49, %v24, 0.0
  %60 = vadd.xlane.f32.xlu0 %v59
  %v61 = vpop.xlane.xlu0 %60
  %v62 = vsel %vm49, %v25, 0.0
  %63 = vadd.xlane.f32.xlu0 %v62
  %v64 = vpop.xlane.xlu0 %63
  %v65 = vsel %vm49, %v26, 0.0
  %66 = vadd.xlane.f32.xlu0 %v65
  %v67 = vpop.xlane.xlu0 %66
  %v68 = vsel %vm49, %v27, 0.0
  %69 = vadd.xlane.f32.xlu0 %v68
  %v70 = vpop.xlane.xlu0 %69
  %v71 = vsel %vm49, %v28, 0.0
  %72 = vadd.xlane.f32.xlu0 %v71
  %v73 = vpop.xlane.xlu0 %72
  %v74 = vsel %vm49, %v29, 0.0
  %75 = vadd.xlane.f32.xlu0 %v74
  %v76 = vpop.xlane.xlu0 %75
  %v77 = vsel %vm49, %v30, 0.0
  %78 = vadd.xlane.f32.xlu0 %v77
  %v79 = vpop.xlane.xlu0 %78
  %v80 = vsel %vm49, %v31, 0.0
  %81 = vadd.xlane.f32.xlu0 %v80
  %v82 = vpop.xlane.xlu0 %81
  %v83 = vsel %vm49, %v32, 0.0
  %84 = vadd.xlane.f32.xlu0 %v83
  %v85 = vpop.xlane.xlu0 %84
  %v86 = vsel %vm49, %v33, 0.0
  %87 = vadd.xlane.f32.xlu0 %v86
  %v88 = vpop.xlane.xlu0 %87
  %v89 = vsel %vm49, %v34, 0.0
  %90 = vadd.xlane.f32.xlu0 %v89
  %v91 = vpop.xlane.xlu0 %90
  %v92 = vsel %vm49, %v35, 0.0
  %93 = vadd.xlane.f32.xlu0 %v92
  %v94 = vpop.xlane.xlu0 %93
  %v95 = vsel %vm49, %v36, 0.0
  %96 = vadd.xlane.f32.xlu0 %v95
  %v97 = vpop.xlane.xlu0 %96
  %v98 = vsel %vm49, %v37, 0.0
  %99 = vadd.xlane.f32.xlu0 %v98
  %v100 = vpop.xlane.xlu0 %99
  %v101 = vsel %vm49, %v38, 0.0
  %102 = vadd.xlane.f32.xlu0 %v101
  %v103 = vpop.xlane.xlu0 %102
  %v104 = vsel %vm49, %v39, 0.0
  %105 = vadd.xlane.f32.xlu0 %v104
  %v106 = vpop.xlane.xlu0 %105
  %v107 = vsel %vm49, %v40, 0.0
  %108 = vadd.xlane.f32.xlu0 %v107
  %v109 = vpop.xlane.xlu0 %108
  %v110 = vsel %vm49, %v41, 0.0
  %111 = vadd.xlane.f32.xlu0 %v110
  %v112 = vpop.xlane.xlu0 %111
  %v113 = vsel %vm49, %v42, 0.0
  %114 = vadd.xlane.f32.xlu0 %v113
  %v115 = vpop.xlane.xlu0 %114
  %v116 = vsel %vm49, %v43, 0.0
  %117 = vadd.xlane.f32.xlu0 %v116
  %v118 = vpop.xlane.xlu0 %117
  %v119 = vsel %vm49, %v44, 0.0
  %120 = vadd.xlane.f32.xlu0 %v119
  %v121 = vpop.xlane.xlu0 %120
  %v122 = vsel %vm49, %v45, 0.0
  %123 = vadd.xlane.f32.xlu0 %v122
  %v124 = vpop.xlane.xlu0 %123
  %v125 = vsel %vm49, %v46, 0.0
  %126 = vadd.xlane.f32.xlu0 %v125
  %v127 = vpop.xlane.xlu0 %126
  %v128 = vsel %vm49, %v47, 0.0
  %129 = vadd.xlane.f32.xlu0 %v128
  %v130 = vpop.xlane.xlu0 %129
  %v131 = vsel %vm49, %v48, 0.0
  %132 = vadd.xlane.f32.xlu0 %v131
  %v133 = vpop.xlane.xlu0 %132
  %v134 = vrcp.pop 32.0
  %v135 = vmul.f32 %v52, %v134
  %v136 = vmul.f32 %v55, %v134
  %v137 = vmul.f32 %v58, %v134
  %v138 = vmul.f32 %v61, %v134
  %v139 = vmul.f32 %v64, %v134
  %v140 = vmul.f32 %v67, %v134
  %v141 = vmul.f32 %v70, %v134
  %v142 = vmul.f32 %v73, %v134
  %v143 = vmul.f32 %v76, %v134
  %v144 = vmul.f32 %v79, %v134
  %v145 = vmul.f32 %v82, %v134
  %v146 = vmul.f32 %v85, %v134
  %v147 = vmul.f32 %v88, %v134
  %v148 = vmul.f32 %v91, %v134
  %v149 = vmul.f32 %v94, %v134
  %v150 = vmul.f32 %v97, %v134
  %v151 = vmul.f32 %v100, %v134
  %v152 = vmul.f32 %v103, %v134
  %v153 = vmul.f32 %v106, %v134
  %v154 = vmul.f32 %v109, %v134
  %v155 = vmul.f32 %v112, %v134
  %v156 = vmul.f32 %v115, %v134
  %v157 = vmul.f32 %v118, %v134
  %v158 = vmul.f32 %v121, %v134
  %v159 = vmul.f32 %v124, %v134
  %v160 = vmul.f32 %v127, %v134
  %v161 = vmul.f32 %v130, %v134
  %v162 = vmul.f32 %v133, %v134
  %v163 = vsub.f32 %v21, %v135
  %v164 = vsub.f32 %v22, %v136
  %v165 = vsub.f32 %v23, %v137
  %v166 = vsub.f32 %v24, %v138
  %v167 = vsub.f32 %v25, %v139
  %v168 = vsub.f32 %v26, %v140
  %v169 = vsub.f32 %v27, %v141
  %v170 = vsub.f32 %v28, %v142
  %v171 = vsub.f32 %v29, %v143
  %v172 = vsub.f32 %v30, %v144
  %v173 = vsub.f32 %v31, %v145
  %v174 = vsub.f32 %v32, %v146
  %v175 = vsub.f32 %v33, %v147
  %v176 = vsub.f32 %v34, %v148
  %v177 = vsub.f32 %v35, %v149
  %v178 = vsub.f32 %v36, %v150
  %v179 = vsub.f32 %v37, %v151
  %v180 = vsub.f32 %v38, %v152
  %v181 = vsub.f32 %v39, %v153
  %v182 = vsub.f32 %v40, %v154
  %v183 = vsub.f32 %v41, %v155
  %v184 = vsub.f32 %v42, %v156
  %v185 = vsub.f32 %v43, %v157
  %v186 = vsub.f32 %v44, %v158
  %v187 = vsub.f32 %v45, %v159
  %v188 = vsub.f32 %v46, %v160
  %v189 = vsub.f32 %v47, %v161
  %v190 = vsub.f32 %v48, %v162
  %v191 = vmul.f32 %v163, %v163
  %v192 = vmul.f32 %v164, %v164
  %v193 = vmul.f32 %v165, %v165
  %v194 = vmul.f32 %v166, %v166
  %v195 = vmul.f32 %v167, %v167
  %v196 = vmul.f32 %v168, %v168
  %v197 = vmul.f32 %v169, %v169
  %v198 = vmul.f32 %v170, %v170
  %v199 = vmul.f32 %v171, %v171
  %v200 = vmul.f32 %v172, %v172
  %v201 = vmul.f32 %v173, %v173
  %v202 = vmul.f32 %v174, %v174
  %v203 = vmul.f32 %v175, %v175
  %v204 = vmul.f32 %v176, %v176
  %v205 = vmul.f32 %v177, %v177
  %v206 = vmul.f32 %v178, %v178
  %v207 = vmul.f32 %v179, %v179
  %v208 = vmul.f32 %v180, %v180
  %v209 = vmul.f32 %v181, %v181
  %v210 = vmul.f32 %v182, %v182
  %v211 = vmul.f32 %v183, %v183
  %v212 = vmul.f32 %v184, %v184
  %v213 = vmul.f32 %v185, %v185
  %v214 = vmul.f32 %v186, %v186
  %v215 = vmul.f32 %v187, %v187
  %v216 = vmul.f32 %v188, %v188
  %v217 = vmul.f32 %v189, %v189
  %v218 = vmul.f32 %v190, %v190
  %v219 = vsel %vm49, %v191, 0.0
  %220 = vadd.xlane.f32.xlu0 %v219
  %v221 = vpop.xlane.xlu0 %220
  %v222 = vsel %vm49, %v192, 0.0
  %223 = vadd.xlane.f32.xlu0 %v222
  %v224 = vpop.xlane.xlu0 %223
  %v225 = vsel %vm49, %v193, 0.0
  %226 = vadd.xlane.f32.xlu0 %v225
  %v227 = vpop.xlane.xlu0 %226
  %v228 = vsel %vm49, %v194, 0.0
  %229 = vadd.xlane.f32.xlu0 %v228
  %v230 = vpop.xlane.xlu0 %229
  %v231 = vsel %vm49, %v195, 0.0
  %232 = vadd.xlane.f32.xlu0 %v231
  %v233 = vpop.xlane.xlu0 %232
  %v234 = vsel %vm49, %v196, 0.0
  %235 = vadd.xlane.f32.xlu0 %v234
  %v236 = vpop.xlane.xlu0 %235
  %v237 = vsel %vm49, %v197, 0.0
  %238 = vadd.xlane.f32.xlu0 %v237
  %v239 = vpop.xlane.xlu0 %238
  %v240 = vsel %vm49, %v198, 0.0
  %241 = vadd.xlane.f32.xlu0 %v240
  %v242 = vpop.xlane.xlu0 %241
  %v243 = vsel %vm49, %v199, 0.0
  %244 = vadd.xlane.f32.xlu0 %v243
  %v245 = vpop.xlane.xlu0 %244
  %v246 = vsel %vm49, %v200, 0.0
  %247 = vadd.xlane.f32.xlu0 %v246
  %v248 = vpop.xlane.xlu0 %247
  %v249 = vsel %vm49, %v201, 0.0
  %250 = vadd.xlane.f32.xlu0 %v249
  %v251 = vpop.xlane.xlu0 %250
  %v252 = vsel %vm49, %v202, 0.0
  %253 = vadd.xlane.f32.xlu0 %v252
  %v254 = vpop.xlane.xlu0 %253
  %v255 = vsel %vm49, %v203, 0.0
  %256 = vadd.xlane.f32.xlu0 %v255
  %v257 = vpop.xlane.xlu0 %256
  %v258 = vsel %vm49, %v204, 0.0
  %259 = vadd.xlane.f32.xlu0 %v258
  %v260 = vpop.xlane.xlu0 %259
  %v261 = vsel %vm49, %v205, 0.0
  %262 = vadd.xlane.f32.xlu0 %v261
  %v263 = vpop.xlane.xlu0 %262
  %v264 = vsel %vm49, %v206, 0.0
  %265 = vadd.xlane.f32.xlu0 %v264
  %v266 = vpop.xlane.xlu0 %265
  %v267 = vsel %vm49, %v207, 0.0
  %268 = vadd.xlane.f32.xlu0 %v267
  %v269 = vpop.xlane.xlu0 %268
  %v270 = vsel %vm49, %v208, 0.0
  %271 = vadd.xlane.f32.xlu0 %v270
  %v272 = vpop.xlane.xlu0 %271
  %v273 = vsel %vm49, %v209, 0.0
  %274 = vadd.xlane.f32.xlu0 %v273
  %v275 = vpop.xlane.xlu0 %274
  %v276 = vsel %vm49, %v210, 0.0
  %277 = vadd.xlane.f32.xlu0 %v276
  %v278 = vpop.xlane.xlu0 %277
  %v279 = vsel %vm49, %v211, 0.0
  %280 = vadd.xlane.f32.xlu0 %v279
  %v281 = vpop.xlane.xlu0 %280
  %v282 = vsel %vm49, %v212, 0.0
  %283 = vadd.xlane.f32.xlu0 %v282
  %v284 = vpop.xlane.xlu0 %283
  %v285 = vsel %vm49, %v213, 0.0
  %286 = vadd.xlane.f32.xlu0 %v285
  %v287 = vpop.xlane.xlu0 %286
  %v288 = vsel %vm49, %v214, 0.0
  %289 = vadd.xlane.f32.xlu0 %v288
  %v290 = vpop.xlane.xlu0 %289
  %v291 = vsel %vm49, %v215, 0.0
  %292 = vadd.xlane.f32.xlu0 %v291
  %v293 = vpop.xlane.xlu0 %292
  %v294 = vsel %vm49, %v216, 0.0
  %295 = vadd.xlane.f32.xlu0 %v294
  %v296 = vpop.xlane.xlu0 %295
  %v297 = vsel %vm49, %v217, 0.0
  %298 = vadd.xlane.f32.xlu0 %v297
  %v299 = vpop.xlane.xlu0 %298
  %v300 = vsel %vm49, %v218, 0.0
  %301 = vadd.xlane.f32.xlu0 %v300
  %v302 = vpop.xlane.xlu0 %301
  %v303 = vmul.f32 %v221, %v134
  %v304 = vmul.f32 %v224, %v134
  %v305 = vmul.f32 %v227, %v134
  %v306 = vmul.f32 %v230, %v134
  %v307 = vmul.f32 %v233, %v134
  %v308 = vmul.f32 %v236, %v134
  %v309 = vmul.f32 %v239, %v134
  %v310 = vmul.f32 %v242, %v134
  %v311 = vmul.f32 %v245, %v134
  %v312 = vmul.f32 %v248, %v134
  %v313 = vmul.f32 %v251, %v134
  %v314 = vmul.f32 %v254, %v134
  %v315 = vmul.f32 %v257, %v134
  %v316 = vmul.f32 %v260, %v134
  %v317 = vmul.f32 %v263, %v134
  %v318 = vmul.f32 %v266, %v134
  %v319 = vmul.f32 %v269, %v134
  %v320 = vmul.f32 %v272, %v134
  %v321 = vmul.f32 %v275, %v134
  %v322 = vmul.f32 %v278, %v134
  %v323 = vmul.f32 %v281, %v134
  %v324 = vmul.f32 %v284, %v134
  %v325 = vmul.f32 %v287, %v134
  %v326 = vmul.f32 %v290, %v134
  %v327 = vmul.f32 %v293, %v134
  %v328 = vmul.f32 %v296, %v134
  %v329 = vmul.f32 %v299, %v134
  %v330 = vmul.f32 %v302, %v134
  %v331 = vadd.f32 %v303, 1e-06
  %v332 = vadd.f32 %v304, 1e-06
  %v333 = vadd.f32 %v305, 1e-06
  %v334 = vadd.f32 %v306, 1e-06
  %v335 = vadd.f32 %v307, 1e-06
  %v336 = vadd.f32 %v308, 1e-06
  %v337 = vadd.f32 %v309, 1e-06
  %v338 = vadd.f32 %v310, 1e-06
  %v339 = vadd.f32 %v311, 1e-06
  %v340 = vadd.f32 %v312, 1e-06
  %v341 = vadd.f32 %v313, 1e-06
  %v342 = vadd.f32 %v314, 1e-06
  %v343 = vadd.f32 %v315, 1e-06
  %v344 = vadd.f32 %v316, 1e-06
  %v345 = vadd.f32 %v317, 1e-06
  %v346 = vadd.f32 %v318, 1e-06
  %v347 = vadd.f32 %v319, 1e-06
  %v348 = vadd.f32 %v320, 1e-06
  %v349 = vadd.f32 %v321, 1e-06
  %v350 = vadd.f32 %v322, 1e-06
  %v351 = vadd.f32 %v323, 1e-06
  %v352 = vadd.f32 %v324, 1e-06
  %v353 = vadd.f32 %v325, 1e-06
  %v354 = vadd.f32 %v326, 1e-06
  %v355 = vadd.f32 %v327, 1e-06
  %v356 = vadd.f32 %v328, 1e-06
  %v357 = vadd.f32 %v329, 1e-06
  %v358 = vadd.f32 %v330, 1e-06
  %v359 = vrsqrt.pop %v331
  %v360 = vrsqrt.pop %v332
  %v361 = vrsqrt.pop %v333
  %v362 = vrsqrt.pop %v334
  %v363 = vrsqrt.pop %v335
  %v364 = vrsqrt.pop %v336
  %v365 = vrsqrt.pop %v337
  %v366 = vrsqrt.pop %v338
  %v367 = vrsqrt.pop %v339
  %v368 = vrsqrt.pop %v340
  %v369 = vrsqrt.pop %v341
  %v370 = vrsqrt.pop %v342
  %v371 = vrsqrt.pop %v343
  %v372 = vrsqrt.pop %v344
  %v373 = vrsqrt.pop %v345
  %v374 = vrsqrt.pop %v346
  %v375 = vrsqrt.pop %v347
  %v376 = vrsqrt.pop %v348
  %v377 = vrsqrt.pop %v349
  %v378 = vrsqrt.pop %v350
  %v379 = vrsqrt.pop %v351
  %v380 = vrsqrt.pop %v352
  %v381 = vrsqrt.pop %v353
  %v382 = vrsqrt.pop %v354
  %v383 = vrsqrt.pop %v355
  %v384 = vrsqrt.pop %v356
  %v385 = vrsqrt.pop %v357
  %v386 = vrsqrt.pop %v358
  %v387 = vmul.f32 %v163, %v359
  %v388 = vmul.f32 %v164, %v360
  %v389 = vmul.f32 %v165, %v361
  %v390 = vmul.f32 %v166, %v362
  %v391 = vmul.f32 %v167, %v363
  %v392 = vmul.f32 %v168, %v364
  %v393 = vmul.f32 %v169, %v365
  %v394 = vmul.f32 %v170, %v366
  %v395 = vmul.f32 %v171, %v367
  %v396 = vmul.f32 %v172, %v368
  %v397 = vmul.f32 %v173, %v369
  %v398 = vmul.f32 %v174, %v370
  %v399 = vmul.f32 %v175, %v371
  %v400 = vmul.f32 %v176, %v372
  %v401 = vmul.f32 %v177, %v373
  %v402 = vmul.f32 %v178, %v374
  %v403 = vmul.f32 %v179, %v375
  %v404 = vmul.f32 %v180, %v376
  %v405 = vmul.f32 %v181, %v377
  %v406 = vmul.f32 %v182, %v378
  %v407 = vmul.f32 %v183, %v379
  %v408 = vmul.f32 %v184, %v380
  %v409 = vmul.f32 %v185, %v381
  %v410 = vmul.f32 %v186, %v382
  %v411 = vmul.f32 %v187, %v383
  %v412 = vmul.f32 %v188, %v384
  %v413 = vmul.f32 %v189, %v385
  %v414 = vmul.f32 %v190, %v386
  %v415 = vld [vmem:[%s1] sm:$0x1]
  %v417 = vlaneseq
  %v418 = vshrl.u32 %v417, 7
  %v419 = vsub.s32 0, %v418
  %v420 = vrot.slane %v415, %v419
  %v422 = vmul.f32 %v387, %v420
  %v423 = vmul.f32 %v388, %v420
  %v424 = vmul.f32 %v389, %v420
  %v425 = vmul.f32 %v390, %v420
  %v426 = vmul.f32 %v391, %v420
  %v427 = vmul.f32 %v392, %v420
  %v428 = vmul.f32 %v393, %v420
  %v429 = vmul.f32 %v394, %v420
  %v430 = vmul.f32 %v395, %v420
  %v431 = vmul.f32 %v396, %v420
  %v432 = vmul.f32 %v397, %v420
  %v433 = vmul.f32 %v398, %v420
  %v434 = vmul.f32 %v399, %v420
  %v435 = vmul.f32 %v400, %v420
  %v436 = vmul.f32 %v401, %v420
  %v437 = vmul.f32 %v402, %v420
  %v438 = vmul.f32 %v403, %v420
  %v439 = vmul.f32 %v404, %v420
  %v440 = vmul.f32 %v405, %v420
  %v441 = vmul.f32 %v406, %v420
  %v442 = vmul.f32 %v407, %v420
  %v443 = vmul.f32 %v408, %v420
  %v444 = vmul.f32 %v409, %v420
  %v445 = vmul.f32 %v410, %v420
  %v446 = vmul.f32 %v411, %v420
  %v447 = vmul.f32 %v412, %v420
  %v448 = vmul.f32 %v413, %v420
  %v449 = vmul.f32 %v414, %v420
  %v450 = vld [vmem:[%s2] sm:$0x1]
  %v452 = vlaneseq
  %v453 = vshrl.u32 %v452, 7
  %v454 = vsub.s32 0, %v453
  %v455 = vrot.slane %v450, %v454
  %v457 = vadd.f32 %v422, %v455
  %v458 = vadd.f32 %v423, %v455
  %v459 = vadd.f32 %v424, %v455
  %v460 = vadd.f32 %v425, %v455
  %v461 = vadd.f32 %v426, %v455
  %v462 = vadd.f32 %v427, %v455
  %v463 = vadd.f32 %v428, %v455
  %v464 = vadd.f32 %v429, %v455
  %v465 = vadd.f32 %v430, %v455
  %v466 = vadd.f32 %v431, %v455
  %v467 = vadd.f32 %v432, %v455
  %v468 = vadd.f32 %v433, %v455
  %v469 = vadd.f32 %v434, %v455
  %v470 = vadd.f32 %v435, %v455
  %v471 = vadd.f32 %v436, %v455
  %v472 = vadd.f32 %v437, %v455
  %v473 = vadd.f32 %v438, %v455
  %v474 = vadd.f32 %v439, %v455
  %v475 = vadd.f32 %v440, %v455
  %v476 = vadd.f32 %v441, %v455
  %v477 = vadd.f32 %v442, %v455
  %v478 = vadd.f32 %v443, %v455
  %v479 = vadd.f32 %v444, %v455
  %v480 = vadd.f32 %v445, %v455
  %v481 = vadd.f32 %v446, %v455
  %v482 = vadd.f32 %v447, %v455
  %v483 = vadd.f32 %v448, %v455
  %v484 = vadd.f32 %v449, %v455
  %v485 = vpack.c.bf16 %v458, %v457
  %v486 = vpack.c.bf16 %v460, %v459
  %v487 = vpack.c.bf16 %v462, %v461
  %v488 = vpack.c.bf16 %v464, %v463
  %v489 = vpack.c.bf16 %v466, %v465
  %v490 = vpack.c.bf16 %v468, %v467
  %v491 = vpack.c.bf16 %v470, %v469
  %v492 = vpack.c.bf16 %v472, %v471
  %v493 = vpack.c.bf16 %v474, %v473
  %v494 = vpack.c.bf16 %v476, %v475
  %v495 = vpack.c.bf16 %v478, %v477
  %v496 = vpack.c.bf16 %v480, %v479
  %v497 = vpack.c.bf16 %v482, %v481
  %v498 = vpack.c.bf16 %v484, %v483
  %v499 = vld [vmem:[%s3] sm:$0xf]
  %v500 = vld [vmem:[%s3 + $0x4] sm:$0xf]
  %v501 = vld [vmem:[%s3 + $0x8] sm:$0xf]
  %v502 = vld [vmem:[%s3 + $0xc] sm:$0xf]
  %v503 = vld [vmem:[%s4] sm:$0x1]
  %v505 = vlaneseq
  %v506 = vshrl.u32 %v505, 7
  %v507 = vsub.s32 0, %v506
  %v508 = vrot.slane %v503, %v507
  %v514 = vunpack.c.l.b16 %v499
  %v515 = vunpack.c.l.b16 %v500
  %v516 = vunpack.c.l.b16 %v501
  %v517 = vunpack.c.l.b16 %v502
  %v518 = vpack.c.b16 %v515, %v514
  %v519 = vpack.c.b16 %v517, %v516
  %v523 = vsel %vm49, %v485, 0
  %v526 = vsel %vm49, %v486, 0
  %v529 = vsel %vm49, %v487, 0
  %v532 = vsel %vm49, %v488, 0
  %v535 = vsel %vm49, %v489, 0
  %v538 = vsel %vm49, %v490, 0
  %v541 = vsel %vm49, %v491, 0
  %v544 = vsel %vm49, %v492, 0
  %v547 = vsel %vm49, %v493, 0
  %v550 = vsel %vm49, %v494, 0
  %v553 = vsel %vm49, %v495, 0
  %v556 = vsel %vm49, %v496, 0
  %v559 = vsel %vm49, %v497, 0
  %v562 = vsel %vm49, %v498, 0
  %564 = vmatprep.subr.bf16.mxu0 0
  %565 = vmatpush1.bf16.msra.mxu0 %v518
  %566 = vmatprep.subr.bf16.mxu0 0
  %567 = vmatpush1.bf16.msra.mxu0 %v519
  %568 = vmatprep.subr.bf16.mxu0 0
  %569 = vmatpush1.bf16.msra.mxu0 0
  %570 = vmatprep.subr.bf16.mxu0 0
  %571 = vmatpush1.bf16.msra.mxu0 0
  %572 = vmatprep.subr.bf16.mxu0 0
  %573 = vmatpush1.bf16.msra.mxu0 0
  %574 = vmatprep.subr.bf16.mxu0 0
  %575 = vmatpush1.bf16.msra.mxu0 0
  %576 = vmatprep.subr.bf16.mxu0 0
  %577 = vmatpush1.bf16.msra.mxu0 0
  %578 = vmatprep.subr.bf16.mxu0 0
  %579 = vmatpush1.bf16.msra.mxu0 0
  %580 = vmatprep.subr.bf16.mxu0 0
  %581 = vmatpush1.bf16.msra.mxu0 0
  %582 = vmatprep.subr.bf16.mxu0 0
  %583 = vmatpush1.bf16.msra.mxu0 0
  %584 = vmatprep.subr.bf16.mxu0 0
  %585 = vmatpush1.bf16.msra.mxu0 0
  %586 = vmatprep.subr.bf16.mxu0 0
  %587 = vmatpush1.bf16.msra.mxu0 0
  %588 = vmatprep.subr.bf16.mxu0 0
  %589 = vmatpush1.bf16.msra.mxu0 0
  %590 = vmatprep.subr.bf16.mxu0 0
  %591 = vmatpush1.bf16.msra.mxu0 0
  %592 = vmatprep.subr.bf16.mxu0 0
  %593 = vmatpush1.bf16.msra.mxu0 0
  %594 = vmatprep.subr.bf16.mxu0 0
  %595 = vmatpush1.bf16.msra.mxu0 0
  %596 = vmatprep.mubr.bf16.mxu0 0
  %597 = vmatmul.mubr.bf16.gmra.mrb[0].mxu0 %v523
  %v598 = vpop.f32.mrb[0].mxu0
  %v599 = vadd.f32 %v508, %v598
  %v600 = vpop.f32.mrb[0].mxu0
  %v601 = vpop.f32.mrb[0].mxu0
  %v602 = vadd.f32 %v508, %v601
  %v603 = vpop.f32.mrb[0].mxu0
  %604 = vmatprep.mubr.bf16.mxu0 0
  %605 = vmatmul.mubr.bf16.gmra.mrb[0].mxu0 %v526
  %v606 = vpop.f32.mrb[0].mxu0
  %v607 = vadd.f32 %v508, %v606
  %v608 = vpop.f32.mrb[0].mxu0
  %v609 = vpop.f32.mrb[0].mxu0
  %v610 = vadd.f32 %v508, %v609
  %v611 = vpop.f32.mrb[0].mxu0
  %612 = vmatprep.mubr.bf16.mxu0 0
  %613 = vmatmul.mubr.bf16.gmra.mrb[0].mxu0 %v529
  %v614 = vpop.f32.mrb[0].mxu0
  %v615 = vadd.f32 %v508, %v614
  %v616 = vpop.f32.mrb[0].mxu0
  %v617 = vpop.f32.mrb[0].mxu0
  %v618 = vadd.f32 %v508, %v617
  %v619 = vpop.f32.mrb[0].mxu0
  %620 = vmatprep.mubr.bf16.mxu0 0
  %621 = vmatmul.mubr.bf16.gmra.mrb[0].mxu0 %v532
  %v622 = vpop.f32.mrb[0].mxu0
  %v623 = vadd.f32 %v508, %v622
  %v624 = vpop.f32.mrb[0].mxu0
  %v625 = vpop.f32.mrb[0].mxu0
  %v626 = vadd.f32 %v508, %v625
  %v627 = vpop.f32.mrb[0].mxu0
  %628 = vmatprep.mubr.bf16.mxu0 0
  %629 = vmatmul.mubr.bf16.gmra.mrb[0].mxu0 %v535
  %v630 = vpop.f32.mrb[0].mxu0
  %v631 = vadd.f32 %v508, %v630
  %v632 = vpop.f32.mrb[0].mxu0
  %v633 = vpop.f32.mrb[0].mxu0
  %v634 = vadd.f32 %v508, %v633
  %v635 = vpop.f32.mrb[0].mxu0
  %636 = vmatprep.mubr.bf16.mxu0 0
  %637 = vmatmul.mubr.bf16.gmra.mrb[0].mxu0 %v538
  %v638 = vpop.f32.mrb[0].mxu0
  %v639 = vadd.f32 %v508, %v638
  %v640 = vpop.f32.mrb[0].mxu0
  %v641 = vpop.f32.mrb[0].mxu0
  %v642 = vadd.f32 %v508, %v641
  %v643 = vpop.f32.mrb[0].mxu0
  %644 = vmatprep.mubr.bf16.mxu0 0
  %645 = vmatmul.mubr.bf16.gmra.mrb[0].mxu0 %v541
  %v646 = vpop.f32.mrb[0].mxu0
  %v647 = vadd.f32 %v508, %v646
  %v648 = vpop.f32.mrb[0].mxu0
  %v649 = vpop.f32.mrb[0].mxu0
  %v650 = vadd.f32 %v508, %v649
  %v651 = vpop.f32.mrb[0].mxu0
  %652 = vmatprep.mubr.bf16.mxu0 0
  %653 = vmatmul.mubr.bf16.gmra.mrb[0].mxu0 %v544
  %v654 = vpop.f32.mrb[0].mxu0
  %v655 = vadd.f32 %v508, %v654
  %v656 = vpop.f32.mrb[0].mxu0
  %v657 = vpop.f32.mrb[0].mxu0
  %v658 = vadd.f32 %v508, %v657
  %v659 = vpop.f32.mrb[0].mxu0
  %660 = vmatprep.mubr.bf16.mxu0 0
  %661 = vmatmul.mubr.bf16.gmra.mrb[0].mxu0 %v547
  %v662 = vpop.f32.mrb[0].mxu0
  %v663 = vadd.f32 %v508, %v662
  %v664 = vpop.f32.mrb[0].mxu0
  %v665 = vpop.f32.mrb[0].mxu0
  %v666 = vadd.f32 %v508, %v665
  %v667 = vpop.f32.mrb[0].mxu0
  %668 = vmatprep.mubr.bf16.mxu0 0
  %669 = vmatmul.mubr.bf16.gmra.mrb[0].mxu0 %v550
  %v670 = vpop.f32.mrb[0].mxu0
  %v671 = vadd.f32 %v508, %v670
  %v672 = vpop.f32.mrb[0].mxu0
  %v673 = vpop.f32.mrb[0].mxu0
  %v674 = vadd.f32 %v508, %v673
  %v675 = vpop.f32.mrb[0].mxu0
  %676 = vmatprep.mubr.bf16.mxu0 0
  %677 = vmatmul.mubr.bf16.gmra.mrb[0].mxu0 %v553
  %v678 = vpop.f32.mrb[0].mxu0
  %v679 = vadd.f32 %v508, %v678
  %v680 = vpop.f32.mrb[0].mxu0
  %v681 = vpop.f32.mrb[0].mxu0
  %v682 = vadd.f32 %v508, %v681
  %v683 = vpop.f32.mrb[0].mxu0
  %684 = vmatprep.mubr.bf16.mxu0 0
  %685 = vmatmul.mubr.bf16.gmra.mrb[0].mxu0 %v556
  %v686 = vpop.f32.mrb[0].mxu0
  %v687 = vadd.f32 %v508, %v686
  %v688 = vpop.f32.mrb[0].mxu0
  %v689 = vpop.f32.mrb[0].mxu0
  %v690 = vadd.f32 %v508, %v689
  %v691 = vpop.f32.mrb[0].mxu0
  %692 = vmatprep.mubr.bf16.mxu0 0
  %693 = vmatmul.mubr.bf16.gmra.mrb[0].mxu0 %v559
  %v694 = vpop.f32.mrb[0].mxu0
  %v695 = vadd.f32 %v508, %v694
  %v696 = vpop.f32.mrb[0].mxu0
  %v697 = vpop.f32.mrb[0].mxu0
  %v698 = vadd.f32 %v508, %v697
  %v699 = vpop.f32.mrb[0].mxu0
  %700 = vmatprep.mubr.bf16.mxu0 0
  %701 = vmatmul.mubr.bf16.gmra.mrb[0].mxu0 %v562
  %v702 = vpop.f32.mrb[0].mxu0
  %v703 = vadd.f32 %v508, %v702
  %v704 = vpop.f32.mrb[0].mxu0
  %v705 = vpop.f32.mrb[0].mxu0
  %v706 = vadd.f32 %v508, %v705
  %v707 = vpop.f32.mrb[0].mxu0
  %708 = vdwg.mxu0
  %v709 = vpack.c.bf16 %v602, %v599
  %v710 = vpack.c.bf16 %v610, %v607
  %v711 = vpack.c.bf16 %v618, %v615
  %v712 = vpack.c.bf16 %v626, %v623
  %v713 = vpack.c.bf16 %v634, %v631
  %v714 = vpack.c.bf16 %v642, %v639
  %v715 = vpack.c.bf16 %v650, %v647
  %v716 = vpack.c.bf16 %v658, %v655
  %v717 = vpack.c.bf16 %v666, %v663
  %v718 = vpack.c.bf16 %v674, %v671
  %v719 = vpack.c.bf16 %v682, %v679
  %v720 = vpack.c.bf16 %v690, %v687
  %v721 = vpack.c.bf16 %v698, %v695
  %v722 = vpack.c.bf16 %v706, %v703
  %v737 = vunpack.c.l.b16 %v709
  %v738 = vunpack.c.h.b16 %v709
  %v739 = vunpack.c.l.b16 %v710
  %v740 = vunpack.c.h.b16 %v710
  %v741 = vunpack.c.l.b16 %v711
  %v742 = vunpack.c.h.b16 %v711
  %v743 = vunpack.c.l.b16 %v712
  %v744 = vunpack.c.h.b16 %v712
  %v745 = vunpack.c.l.b16 %v713
  %v746 = vunpack.c.h.b16 %v713
  %v747 = vunpack.c.l.b16 %v714
  %v748 = vunpack.c.h.b16 %v714
  %v749 = vunpack.c.l.b16 %v715
  %v750 = vunpack.c.h.b16 %v715
  %v751 = vunpack.c.l.b16 %v716
  %v752 = vunpack.c.h.b16 %v716
  %v753 = vunpack.c.l.b16 %v717
  %v754 = vunpack.c.h.b16 %v717
  %v755 = vunpack.c.l.b16 %v718
  %v756 = vunpack.c.h.b16 %v718
  %v757 = vunpack.c.l.b16 %v719
  %v758 = vunpack.c.h.b16 %v719
  %v759 = vunpack.c.l.b16 %v720
  %v760 = vunpack.c.h.b16 %v720
  %v761 = vunpack.c.l.b16 %v721
  %v762 = vunpack.c.h.b16 %v721
  %v763 = vunpack.c.l.b16 %v722
  %v764 = vunpack.c.h.b16 %v722
  %v765 = vpack.c.b16 %v737, %v737
  %v766 = vpack.c.b16 %v738, %v738
  %v767 = vpack.c.b16 %v739, %v739
  %v768 = vpack.c.b16 %v740, %v740
  %v769 = vpack.c.b16 %v741, %v741
  %v770 = vpack.c.b16 %v742, %v742
  %v771 = vpack.c.b16 %v743, %v743
  %v772 = vpack.c.b16 %v744, %v744
  %v773 = vpack.c.b16 %v745, %v745
  %v774 = vpack.c.b16 %v746, %v746
  %v775 = vpack.c.b16 %v747, %v747
  %v776 = vpack.c.b16 %v748, %v748
  %v777 = vpack.c.b16 %v749, %v749
  %v778 = vpack.c.b16 %v750, %v750
  %v779 = vpack.c.b16 %v751, %v751
  %v780 = vpack.c.b16 %v752, %v752
  %v781 = vpack.c.b16 %v753, %v753
  %v782 = vpack.c.b16 %v754, %v754
  %v783 = vpack.c.b16 %v755, %v755
  %v784 = vpack.c.b16 %v756, %v756
  %v785 = vpack.c.b16 %v757, %v757
  %v786 = vpack.c.b16 %v758, %v758
  %v787 = vpack.c.b16 %v759, %v759
  %v788 = vpack.c.b16 %v760, %v760
  %v789 = vpack.c.b16 %v761, %v761
  %v790 = vpack.c.b16 %v762, %v762
  %v791 = vpack.c.b16 %v763, %v763
  %v792 = vpack.c.b16 %v764, %v764
  %vm821 = vcmask 257024
  %822 = vst.msk [vmem:[%s5] sm:$0xf] %vm821, %v765
  %823 = vst.msk [vmem:[%s5 + $0x4] sm:$0xf] %vm821, %v766
  %824 = vst.msk [vmem:[%s5 + $0x8] sm:$0xf] %vm821, %v767
  %825 = vst.msk [vmem:[%s5 + $0xc] sm:$0xf] %vm821, %v768
  %826 = vst.msk [vmem:[%s5 + $0x10] sm:$0xf] %vm821, %v769
  %827 = vst.msk [vmem:[%s5 + $0x14] sm:$0xf] %vm821, %v770
  %828 = vst.msk [vmem:[%s5 + $0x18] sm:$0xf] %vm821, %v771
  %829 = vst.msk [vmem:[%s5 + $0x1c] sm:$0xf] %vm821, %v772
  %830 = vst.msk [vmem:[%s5 + $0x20] sm:$0xf] %vm821, %v773
  %831 = vst.msk [vmem:[%s5 + $0x24] sm:$0xf] %vm821, %v774
  %832 = vst.msk [vmem:[%s5 + $0x28] sm:$0xf] %vm821, %v775
  %833 = vst.msk [vmem:[%s5 + $0x2c] sm:$0xf] %vm821, %v776
  %834 = vst.msk [vmem:[%s5 + $0x30] sm:$0xf] %vm821, %v777
  %835 = vst.msk [vmem:[%s5 + $0x34] sm:$0xf] %vm821, %v778
  %836 = vst.msk [vmem:[%s5 + $0x38] sm:$0xf] %vm821, %v779
  %837 = vst.msk [vmem:[%s5 + $0x3c] sm:$0xf] %vm821, %v780
  %838 = vst.msk [vmem:[%s5 + $0x40] sm:$0xf] %vm821, %v781
  %839 = vst.msk [vmem:[%s5 + $0x44] sm:$0xf] %vm821, %v782
  %840 = vst.msk [vmem:[%s5 + $0x48] sm:$0xf] %vm821, %v783
  %841 = vst.msk [vmem:[%s5 + $0x4c] sm:$0xf] %vm821, %v784
  %842 = vst.msk [vmem:[%s5 + $0x50] sm:$0xf] %vm821, %v785
  %843 = vst.msk [vmem:[%s5 + $0x54] sm:$0xf] %vm821, %v786
  %844 = vst.msk [vmem:[%s5 + $0x58] sm:$0xf] %vm821, %v787
  %845 = vst.msk [vmem:[%s5 + $0x5c] sm:$0xf] %vm821, %v788
  %846 = vst.msk [vmem:[%s5 + $0x60] sm:$0xf] %vm821, %v789
  %847 = vst.msk [vmem:[%s5 + $0x64] sm:$0xf] %vm821, %v790
  %848 = vst.msk [vmem:[%s5 + $0x68] sm:$0xf] %vm821, %v791
  %849 = vst.msk [vmem:[%s5 + $0x6c] sm:$0xf] %vm821, %v792
  // Predicated region
  $region22: #{tpu_custom_call.1} parent=0 // pred_check
    _
  $region23: #{tpu_custom_call.1} parent=0 // pred_check_branch
    %851 = sbr.rel (0) target = $region25
  $region24: #{tpu_custom_call.1} parent=0 // pred_region
    _
  $region25: #{tpu_custom_call.1} parent=0 // pred_fallthru
    _
  // Predicated region
  $region26: #{tpu_custom_call.1} parent=0 // pred_check
    _
  $region27: #{tpu_custom_call.1} parent=0 // pred_check_branch
    %853 = sbr.rel (0) target = $region29
  $region28: #{tpu_custom_call.1} parent=0 // pred_region
    _
  $region29: #{tpu_custom_call.1} parent=0 // pred_fallthru
    _

</llo_original>
